<compile_context>
chip_gen: v5e
topology: v5e:2x2
jax: 0.10.0
libtpu: 0.0.40
codegen_flags: <defaults>
</compile_context>

<pallas_src>
import functools
import math

import numpy as np
import jax
import jax.numpy as jnp
from jax import lax
from jax.experimental import pallas as pl
from jax.experimental.pallas import tpu as pltpu


# ----------------------------------------------------------------------------
# exact (erf-based) GELU, built only from ops guaranteed to lower on Mosaic
# ----------------------------------------------------------------------------
def _erf(x):
    # Abramowitz & Stegun 7.1.26, |error| <= 1.5e-7 -- matches nn.GELU()
    # (exact) semantics to well below the test tolerance.
    p = 0.3275911
    a1, a2, a3, a4, a5 = (0.254829592, -0.284496736, 1.421413741,
                          -1.453152027, 1.061405429)
    s = jnp.where(x >= 0.0, 1.0, -1.0)
    ax = jnp.abs(x)
    t = 1.0 / (1.0 + p * ax)
    poly = ((((a5 * t + a4) * t + a3) * t + a2) * t + a1) * t
    return s * (1.0 - poly * jnp.exp(-ax * ax))


def _gelu_exact(x):
    return 0.5 * x * (1.0 + _erf(x * (1.0 / math.sqrt(2.0))))


# ----------------------------------------------------------------------------
# Fused TCMlp kernel: one batch element per grid step, everything in VMEM
# ----------------------------------------------------------------------------
def _tcmlp_kernel(H, W, pad0,
                  x_ref, w1_ref, b1_ref, skipw_ref, dww_ref, dwb_ref,
                  w2_ref, b2_ref, mleft_ref, mright_ref,
                  o_ref, tokpad_ref):
    N = H * W
    x = x_ref[0]                                          # (N, Cin)

    # ---- fc1 ----------------------------------------------------------------
    h = jnp.dot(x, w1_ref[...], preferred_element_type=jnp.float32)
    h = h + b1_ref[...]                                   # (N, Ch) f32

    # ---- TokenConv skip path: depthwise 1x1 Conv1d, no bias ------------------
    skip = h * skipw_ref[...]                             # per-channel scale

    # ---- TokenConv main path: token2map -> 3x3 dw-conv -> map2token ----------
    # Grid tokens: token n <-> map position (i, j) = (n // W, n % W), so the
    # spatial neighbour (i+dy, j+dx) is token n + dy*W + dx.  Each conv tap is
    # a static shifted slice of a zero-padded copy of the token sequence kept
    # in VMEM scratch; the +-1 column taps are masked where they would wrap
    # across a row edge (mask inputs are 0/1 f32, precomputed on the host).
    tokpad_ref[...] = jnp.zeros_like(tokpad_ref)
    tokpad_ref[pad0:pad0 + N, :] = h

    dww = dww_ref[...]                                    # (9, Ch) tap weights
    col_mask = {-1: mleft_ref[...], 1: mright_ref[...]}   # (N, 1) 0/1 masks
    acc = jnp.zeros_like(h)
    for u in range(3):                                    # dy = u - 1
        for v in range(3):                                # dx = v - 1
            dy, dx = u - 1, v - 1
            start = pad0 + dy * W + dx                    # static, in-bounds
            tap = tokpad_ref[pl.ds(start, N), :]          # (N, Ch)
            if dx != 0:                                   # kill row wrap-around
                tap = tap * col_mask[dx]
            t_idx = 3 * u + v
            acc = acc + tap * dww[t_idx:t_idx + 1, :]
    conv_tok = acc + dwb_ref[...]                         # map2token == identity

    # ---- GELU (exact) + fc2  (dropout = identity in eval mode) ---------------
    y = _gelu_exact(skip + conv_tok)
    out = jnp.dot(y, w2_ref[...], preferred_element_type=jnp.float32)
    o_ref[0] = (out + b2_ref[...]).astype(o_ref.dtype)


# ----------------------------------------------------------------------------
# Wrapper
# ----------------------------------------------------------------------------
def tcmlp_forward(params, x, map_size):
    """Fused TCMlp forward.

    x: (B, N, C_in) tokens, channels last, with N == H*W (grid tokens, i.e.
    idx_token == arange -- the fast path that token2map / map2token reduce to).
    """
    H, W = map_size
    B, N, Cin = x.shape
    assert N == H * W, "grid-token path requires N == H * W"
    Ch = params["fc1_w"].shape[1]
    Cout = params["fc2_w"].shape[1]

    # Leading pad rounded up to the 8-sublane tile so the interior store is
    # aligned; pads on both sides cover the largest tap shift (W + 1).
    pad0 = ((W + 1 + 7) // 8) * 8
    pad_rows = pad0 + N + W + 1

    # 0/1 masks (tiny, N floats) that invalidate the +-1 column taps at row
    # edges.  Computed on the host once per call -- negligible.
    col = np.arange(N) % W
    mask_left = (col >= 1).astype(np.float32).reshape(N, 1)        # dx = -1
    mask_right = (col <= W - 2).astype(np.float32).reshape(N, 1)   # dx = +1

    flops = B * N * (2 * Ch * (Cin + Cout) + 20 * Ch)
    bytes_accessed = 4 * (B * N * (Cin + Cout)
                          + Ch * (Cin + Cout + 12) + Cout + 2 * N)

    kernel = functools.partial(_tcmlp_kernel, H, W, pad0)
    out = pl.pallas_call(
        kernel,
        out_shape=jax.ShapeDtypeStruct((B, N, Cout), x.dtype),
        grid=(B,),
        in_specs=[
            pl.BlockSpec((1, N, Cin), lambda b: (b, 0, 0)),   # x (one batch)
            pl.BlockSpec((Cin, Ch), lambda b: (0, 0)),        # fc1_w (K, N)
            pl.BlockSpec((1, Ch), lambda b: (0, 0)),          # fc1_b
            pl.BlockSpec((1, Ch), lambda b: (0, 0)),          # skip_w
            pl.BlockSpec((9, Ch), lambda b: (0, 0)),          # dw_w (taps, C)
            pl.BlockSpec((1, Ch), lambda b: (0, 0)),          # dw_b
            pl.BlockSpec((Ch, Cout), lambda b: (0, 0)),       # fc2_w (K, N)
            pl.BlockSpec((1, Cout), lambda b: (0, 0)),        # fc2_b
            pl.BlockSpec((N, 1), lambda b: (0, 0)),           # mask_left
            pl.BlockSpec((N, 1), lambda b: (0, 0)),           # mask_right
        ],
        out_specs=pl.BlockSpec((1, N, Cout), lambda b: (b, 0, 0)),
        scratch_shapes=[pltpu.VMEM((pad_rows, Ch), jnp.float32)],
        compiler_params=pltpu.CompilerParams(
            dimension_semantics=("parallel",)),
        cost_estimate=pl.CostEstimate(flops=flops,
                                      transcendentals=B * N * Ch,
                                      bytes_accessed=bytes_accessed),
    )(x, params["fc1_w"], params["fc1_b"], params["skip_w"], params["dw_w"],
      params["dw_b"], params["fc2_w"], params["fc2_b"],
      jnp.asarray(mask_left), jnp.asarray(mask_right))
    return out
    # TODO(synk): clustered-token path of token2map / map2token (sparse
    # scatter/gather driven by idx_token / agg_weight) is not implemented;
    # only the grid-token fast path (N == H*W) is covered.
    # TODO(synk): for very long token sequences, add an N-tile grid axis with
    # a +-W halo on the conv scratch so per-step VMEM stays bounded.


# ----------------------------------------------------------------------------
# Pure-JAX reference (mirrors the PyTorch forward) for the sanity check
# ----------------------------------------------------------------------------
def tcmlp_reference(params, x, map_size):
    H, W = map_size
    B, N, _ = x.shape
    hi = lax.Precision.HIGHEST

    h = jnp.dot(x, params["fc1_w"], precision=hi) + params["fc1_b"]
    Ch = h.shape[-1]

    # TokenConv: depthwise 1x1 Conv1d skip (no bias) ...
    skip = h * params["skip_w"]
    # ... plus token2map -> depthwise 3x3 Conv2d (+bias) -> map2token.
    hmap = jnp.transpose(h.reshape(B, H, W, Ch), (0, 3, 1, 2))          # NCHW
    w_oihw = jnp.transpose(params["dw_w"], (1, 0)).reshape(Ch, 3, 3)[:, None]
    conv = lax.conv_general_dilated(
        hmap, w_oihw, window_strides=(1, 1), padding=((1, 1), (1, 1)),
        dimension_numbers=("NCHW", "OIHW", "NCHW"),
        feature_group_count=Ch, precision=hi)
    conv = conv + params["dw_b"].reshape(1, Ch, 1, 1)
    conv_tok = jnp.transpose(conv, (0, 2, 3, 1)).reshape(B, N, Ch)

    y = jax.nn.gelu(skip + conv_tok, approximate=False)   # nn.GELU() default
    return jnp.dot(y, params["fc2_w"], precision=hi) + params["fc2_b"]


# ----------------------------------------------------------------------------
# Deterministic synthetic parameters in kernel-friendly layouts
# ----------------------------------------------------------------------------
def init_params(key, in_features, hidden_features=None, out_features=None):
    """Weights stored once in (K, N) layout (transposed PyTorch layout) and
    the depthwise 3x3 weight as (9 taps, C) with channels on the lane axis.
    Biases are small nonzero values so the bias paths are exercised (the
    PyTorch init would zero them; forward semantics are unaffected)."""
    hidden_features = hidden_features or in_features
    out_features = out_features or in_features
    ks = jax.random.split(key, 7)

    def trunc_normal(k, shape, std=0.02):
        return jax.random.truncated_normal(k, -2.0, 2.0, shape, jnp.float32) * std

    dw_std = math.sqrt(2.0 / 9.0)      # Conv2d init: fan_out = 3*3*C/groups = 9
    return {
        "fc1_w": trunc_normal(ks[0], (in_features, hidden_features)),
        "fc1_b": 0.1 * jax.random.normal(ks[1], (1, hidden_features), jnp.float32),
        "skip_w": 0.5 * jax.random.normal(ks[2], (1, hidden_features), jnp.float32),
        "dw_w": dw_std * jax.random.normal(ks[3], (9, hidden_features), jnp.float32),
        "dw_b": 0.1 * jax.random.normal(ks[4], (1, hidden_features), jnp.float32),
        "fc2_w": trunc_normal(ks[5], (hidden_features, out_features)),
        "fc2_b": 0.1 * jax.random.normal(ks[6], (1, out_features), jnp.float32),
    }


if __name__ == "__main__":
    B, H, W = 2, 4, 4
    N = H * W
    C_IN, C_HID, C_OUT = 32, 64, 32

    root = jax.random.PRNGKey(0)
    kp, kx = jax.random.split(root)
    params = init_params(kp, C_IN, C_HID, C_OUT)
    x = jax.random.normal(kx, (B, N, C_IN), jnp.float32)

    out = jax.block_until_ready(tcmlp_forward(params, x, (H, W)))
    ref = tcmlp_reference(params, x, (H, W))

    assert out.shape == (B, N, C_OUT), out.shape
    max_err = float(jnp.max(jnp.abs(out - ref)))
    assert jnp.allclose(out, ref, atol=1e-4, rtol=1e-4), max_err

    print("KERNEL_OK")
</pallas_src>

<mosaic_0001>
module attributes {stable_mosaic.version = 11 : i64} {
  func.func @_tcmlp_kernel(%arg0: i32, %arg1: memref<1x16x32xf32, #tpu.memory_space<vmem>>, %arg2: memref<32x64xf32, #tpu.memory_space<vmem>>, %arg3: memref<1x64xf32, #tpu.memory_space<vmem>>, %arg4: memref<1x64xf32, #tpu.memory_space<vmem>>, %arg5: memref<9x64xf32, #tpu.memory_space<vmem>>, %arg6: memref<1x64xf32, #tpu.memory_space<vmem>>, %arg7: memref<64x32xf32, #tpu.memory_space<vmem>>, %arg8: memref<1x32xf32, #tpu.memory_space<vmem>>, %arg9: memref<16x1xf32, #tpu.memory_space<vmem>>, %arg10: memref<16x1xf32, #tpu.memory_space<vmem>>, %arg11: memref<1x16x32xf32, #tpu.memory_space<vmem>>, %arg12: memref<29x64xf32, #tpu.memory_space<vmem>>) attributes {dimension_semantics = [#tpu.dimension_semantics<parallel>], iteration_bounds = array<i64: 2>, scalar_prefetch = 0 : i64, scratch_operands = 1 : i64, tpu.core_type = #tpu.core_type<tc>, window_params = [{transform_indices = @transform_0, window_bounds = array<i64: 1, 16, 32>}, {pipeline_mode = #tpu.pipeline_mode<synchronous>, transform_indices = @transform_1, window_bounds = array<i64: 32, 64>}, {pipeline_mode = #tpu.pipeline_mode<synchronous>, transform_indices = @transform_2, window_bounds = array<i64: 1, 64>}, {pipeline_mode = #tpu.pipeline_mode<synchronous>, transform_indices = @transform_3, window_bounds = array<i64: 1, 64>}, {pipeline_mode = #tpu.pipeline_mode<synchronous>, transform_indices = @transform_4, window_bounds = array<i64: 9, 64>}, {pipeline_mode = #tpu.pipeline_mode<synchronous>, transform_indices = @transform_5, window_bounds = array<i64: 1, 64>}, {pipeline_mode = #tpu.pipeline_mode<synchronous>, transform_indices = @transform_6, window_bounds = array<i64: 64, 32>}, {pipeline_mode = #tpu.pipeline_mode<synchronous>, transform_indices = @transform_7, window_bounds = array<i64: 1, 32>}, {pipeline_mode = #tpu.pipeline_mode<synchronous>, transform_indices = @transform_8, window_bounds = array<i64: 16, 1>}, {pipeline_mode = #tpu.pipeline_mode<synchronous>, transform_indices = @transform_9, window_bounds = array<i64: 16, 1>}, {transform_indices = @transform_10, window_bounds = array<i64: 1, 16, 32>}]} {
    %c0 = arith.constant 0 : index
    %c0_0 = arith.constant 0 : index
    %c0_1 = arith.constant 0 : index
    %0 = vector.load %arg1[%c0, %c0_0, %c0_1] : memref<1x16x32xf32, #tpu.memory_space<vmem>>, vector<1x16x32xf32>
    %1 = vector.shape_cast %0 : vector<1x16x32xf32> to vector<16x32xf32>
    %c0_2 = arith.constant 0 : index
    %c0_3 = arith.constant 0 : index
    %2 = vector.load %arg2[%c0_2, %c0_3] : memref<32x64xf32, #tpu.memory_space<vmem>>, vector<32x64xf32>
    %cst = arith.constant dense<0.000000e+00> : vector<16x64xf32>
    %3 = tpu.matmul %1, %2, %cst {dimension_numbers = #tpu.dot_dimension_numbers<[1], [0], [0], [1], [0, 0, 1, 1], [], []>} : vector<16x32xf32>, vector<32x64xf32>, vector<16x64xf32> -> vector<16x64xf32>
    %c0_4 = arith.constant 0 : index
    %c0_5 = arith.constant 0 : index
    %4 = vector.load %arg3[%c0_4, %c0_5] : memref<1x64xf32, #tpu.memory_space<vmem>>, vector<1x64xf32>
    %5 = vector.broadcast %4 : vector<1x64xf32> to vector<16x64xf32>
    %6 = arith.addf %3, %5 : vector<16x64xf32>
    %c0_6 = arith.constant 0 : index
    %c0_7 = arith.constant 0 : index
    %7 = vector.load %arg4[%c0_6, %c0_7] : memref<1x64xf32, #tpu.memory_space<vmem>>, vector<1x64xf32>
    %8 = vector.broadcast %7 : vector<1x64xf32> to vector<16x64xf32>
    %9 = arith.mulf %6, %8 : vector<16x64xf32>
    %cst_8 = arith.constant 0.000000e+00 : f32
    %10 = vector.broadcast %cst_8 : f32 to vector<29x64xf32>
    %c0_9 = arith.constant 0 : index
    %c0_10 = arith.constant 0 : index
    %11 = vector.load %arg12[%c0_9, %c0_10] : memref<29x64xf32, #tpu.memory_space<vmem>>, vector<29x64xf32>
    tpu.vector_store %arg12[%c0_9, %c0_10], %10 {strides = array<i32>} : memref<29x64xf32, #tpu.memory_space<vmem>>, vector<29x64xf32>,
    %c8 = arith.constant 8 : index
    %c0_11 = arith.constant 0 : index
    %12 = vector.load %arg12[%c8, %c0_11] : memref<29x64xf32, #tpu.memory_space<vmem>>, vector<16x64xf32>
    tpu.vector_store %arg12[%c8, %c0_11], %6 {strides = array<i32>} : memref<29x64xf32, #tpu.memory_space<vmem>>, vector<16x64xf32>,
    %c0_12 = arith.constant 0 : index
    %c0_13 = arith.constant 0 : index
    %13 = vector.load %arg5[%c0_12, %c0_13] : memref<9x64xf32, #tpu.memory_space<vmem>>, vector<9x64xf32>
    %c0_14 = arith.constant 0 : index
    %c0_15 = arith.constant 0 : index
    %14 = vector.load %arg9[%c0_14, %c0_15] : memref<16x1xf32, #tpu.memory_space<vmem>>, vector<16x1xf32>
    %c0_16 = arith.constant 0 : index
    %c0_17 = arith.constant 0 : index
    %15 = vector.load %arg10[%c0_16, %c0_17] : memref<16x1xf32, #tpu.memory_space<vmem>>, vector<16x1xf32>
    %cst_18 = arith.constant 0.000000e+00 : f32
    %16 = vector.broadcast %cst_18 : f32 to vector<16x64xf32>
    %c3 = arith.constant 3 : index
    %c0_19 = arith.constant 0 : index
    %17 = vector.load %arg12[%c3, %c0_19] : memref<29x64xf32, #tpu.memory_space<vmem>>, vector<16x64xf32>
    %18 = vector.broadcast %14 : vector<16x1xf32> to vector<16x64xf32>
    %19 = arith.mulf %17, %18 : vector<16x64xf32>
    %20 = vector.extract_strided_slice %13 {offsets = [0, 0], sizes = [1, 64], strides = [1, 1]} : vector<9x64xf32> to vector<1x64xf32>
    %21 = vector.broadcast %20 : vector<1x64xf32> to vector<16x64xf32>
    %22 = arith.mulf %19, %21 : vector<16x64xf32>
    %23 = arith.addf %16, %22 : vector<16x64xf32>
    %c4 = arith.constant 4 : index
    %c0_20 = arith.constant 0 : index
    %24 = vector.load %arg12[%c4, %c0_20] : memref<29x64xf32, #tpu.memory_space<vmem>>, vector<16x64xf32>
    %25 = vector.extract_strided_slice %13 {offsets = [1, 0], sizes = [1, 64], strides = [1, 1]} : vector<9x64xf32> to vector<1x64xf32>
    %26 = vector.broadcast %25 : vector<1x64xf32> to vector<16x64xf32>
    %27 = arith.mulf %24, %26 : vector<16x64xf32>
    %28 = arith.addf %23, %27 : vector<16x64xf32>
    %c5 = arith.constant 5 : index
    %c0_21 = arith.constant 0 : index
    %29 = vector.load %arg12[%c5, %c0_21] : memref<29x64xf32, #tpu.memory_space<vmem>>, vector<16x64xf32>
    %30 = vector.broadcast %15 : vector<16x1xf32> to vector<16x64xf32>
    %31 = arith.mulf %29, %30 : vector<16x64xf32>
    %32 = vector.extract_strided_slice %13 {offsets = [2, 0], sizes = [1, 64], strides = [1, 1]} : vector<9x64xf32> to vector<1x64xf32>
    %33 = vector.broadcast %32 : vector<1x64xf32> to vector<16x64xf32>
    %34 = arith.mulf %31, %33 : vector<16x64xf32>
    %35 = arith.addf %28, %34 : vector<16x64xf32>
    %c7 = arith.constant 7 : index
    %c0_22 = arith.constant 0 : index
    %36 = vector.load %arg12[%c7, %c0_22] : memref<29x64xf32, #tpu.memory_space<vmem>>, vector<16x64xf32>
    %37 = vector.broadcast %14 : vector<16x1xf32> to vector<16x64xf32>
    %38 = arith.mulf %36, %37 : vector<16x64xf32>
    %39 = vector.extract_strided_slice %13 {offsets = [3, 0], sizes = [1, 64], strides = [1, 1]} : vector<9x64xf32> to vector<1x64xf32>
    %40 = vector.broadcast %39 : vector<1x64xf32> to vector<16x64xf32>
    %41 = arith.mulf %38, %40 : vector<16x64xf32>
    %42 = arith.addf %35, %41 : vector<16x64xf32>
    %c8_23 = arith.constant 8 : index
    %c0_24 = arith.constant 0 : index
    %43 = vector.load %arg12[%c8_23, %c0_24] : memref<29x64xf32, #tpu.memory_space<vmem>>, vector<16x64xf32>
    %44 = vector.extract_strided_slice %13 {offsets = [4, 0], sizes = [1, 64], strides = [1, 1]} : vector<9x64xf32> to vector<1x64xf32>
    %45 = vector.broadcast %44 : vector<1x64xf32> to vector<16x64xf32>
    %46 = arith.mulf %43, %45 : vector<16x64xf32>
    %47 = arith.addf %42, %46 : vector<16x64xf32>
    %c9 = arith.constant 9 : index
    %c0_25 = arith.constant 0 : index
    %48 = vector.load %arg12[%c9, %c0_25] : memref<29x64xf32, #tpu.memory_space<vmem>>, vector<16x64xf32>
    %49 = vector.broadcast %15 : vector<16x1xf32> to vector<16x64xf32>
    %50 = arith.mulf %48, %49 : vector<16x64xf32>
    %51 = vector.extract_strided_slice %13 {offsets = [5, 0], sizes = [1, 64], strides = [1, 1]} : vector<9x64xf32> to vector<1x64xf32>
    %52 = vector.broadcast %51 : vector<1x64xf32> to vector<16x64xf32>
    %53 = arith.mulf %50, %52 : vector<16x64xf32>
    %54 = arith.addf %47, %53 : vector<16x64xf32>
    %c11 = arith.constant 11 : index
    %c0_26 = arith.constant 0 : index
    %55 = vector.load %arg12[%c11, %c0_26] : memref<29x64xf32, #tpu.memory_space<vmem>>, vector<16x64xf32>
    %56 = vector.broadcast %14 : vector<16x1xf32> to vector<16x64xf32>
    %57 = arith.mulf %55, %56 : vector<16x64xf32>
    %58 = vector.extract_strided_slice %13 {offsets = [6, 0], sizes = [1, 64], strides = [1, 1]} : vector<9x64xf32> to vector<1x64xf32>
    %59 = vector.broadcast %58 : vector<1x64xf32> to vector<16x64xf32>
    %60 = arith.mulf %57, %59 : vector<16x64xf32>
    %61 = arith.addf %54, %60 : vector<16x64xf32>
    %c12 = arith.constant 12 : index
    %c0_27 = arith.constant 0 : index
    %62 = vector.load %arg12[%c12, %c0_27] : memref<29x64xf32, #tpu.memory_space<vmem>>, vector<16x64xf32>
    %63 = vector.extract_strided_slice %13 {offsets = [7, 0], sizes = [1, 64], strides = [1, 1]} : vector<9x64xf32> to vector<1x64xf32>
    %64 = vector.broadcast %63 : vector<1x64xf32> to vector<16x64xf32>
    %65 = arith.mulf %62, %64 : vector<16x64xf32>
    %66 = arith.addf %61, %65 : vector<16x64xf32>
    %c13 = arith.constant 13 : index
    %c0_28 = arith.constant 0 : index
    %67 = vector.load %arg12[%c13, %c0_28] : memref<29x64xf32, #tpu.memory_space<vmem>>, vector<16x64xf32>
    %68 = vector.broadcast %15 : vector<16x1xf32> to vector<16x64xf32>
    %69 = arith.mulf %67, %68 : vector<16x64xf32>
    %70 = vector.extract_strided_slice %13 {offsets = [8, 0], sizes = [1, 64], strides = [1, 1]} : vector<9x64xf32> to vector<1x64xf32>
    %71 = vector.broadcast %70 : vector<1x64xf32> to vector<16x64xf32>
    %72 = arith.mulf %69, %71 : vector<16x64xf32>
    %73 = arith.addf %66, %72 : vector<16x64xf32>
    %c0_29 = arith.constant 0 : index
    %c0_30 = arith.constant 0 : index
    %74 = vector.load %arg6[%c0_29, %c0_30] : memref<1x64xf32, #tpu.memory_space<vmem>>, vector<1x64xf32>
    %75 = vector.broadcast %74 : vector<1x64xf32> to vector<16x64xf32>
    %76 = arith.addf %73, %75 : vector<16x64xf32>
    %77 = arith.addf %9, %76 : vector<16x64xf32>
    %cst_31 = arith.constant 5.000000e-01 : f32
    %78 = vector.broadcast %cst_31 : f32 to vector<16x64xf32>
    %79 = arith.mulf %78, %77 : vector<16x64xf32>
    %cst_32 = arith.constant 0.707106769 : f32
    %80 = vector.broadcast %cst_32 : f32 to vector<16x64xf32>
    %81 = arith.mulf %77, %80 : vector<16x64xf32>
    %cst_33 = arith.constant 0.000000e+00 : f32
    %82 = vector.broadcast %cst_33 : f32 to vector<16x64xf32>
    %83 = arith.cmpf oge, %81, %82 : vector<16x64xf32>
    %cst_34 = arith.constant 1.000000e+00 : f32
    %cst_35 = arith.constant -1.000000e+00 : f32
    %84 = vector.broadcast %cst_34 : f32 to vector<16x64xf32>
    %85 = vector.broadcast %cst_35 : f32 to vector<16x64xf32>
    %86 = arith.select %83, %84, %85 : vector<16x64xi1>, vector<16x64xf32>
    %87 = math.absf %81 : vector<16x64xf32>
    %cst_36 = arith.constant 0.327591091 : f32
    %88 = vector.broadcast %cst_36 : f32 to vector<16x64xf32>
    %89 = arith.mulf %88, %87 : vector<16x64xf32>
    %cst_37 = arith.constant 1.000000e+00 : f32
    %90 = vector.broadcast %cst_37 : f32 to vector<16x64xf32>
    %91 = arith.addf %90, %89 : vector<16x64xf32>
    %cst_38 = arith.constant 1.000000e+00 : f32
    %92 = vector.broadcast %cst_38 : f32 to vector<16x64xf32>
    %93 = arith.divf %92, %91 : vector<16x64xf32>
    %cst_39 = arith.constant 1.06140542 : f32
    %94 = vector.broadcast %cst_39 : f32 to vector<16x64xf32>
    %95 = arith.mulf %94, %93 : vector<16x64xf32>
    %cst_40 = arith.constant -1.45315206 : f32
    %96 = vector.broadcast %cst_40 : f32 to vector<16x64xf32>
    %97 = arith.addf %95, %96 : vector<16x64xf32>
    %98 = arith.mulf %97, %93 : vector<16x64xf32>
    %cst_41 = arith.constant 1.42141378 : f32
    %99 = vector.broadcast %cst_41 : f32 to vector<16x64xf32>
    %100 = arith.addf %98, %99 : vector<16x64xf32>
    %101 = arith.mulf %100, %93 : vector<16x64xf32>
    %cst_42 = arith.constant -0.284496725 : f32
    %102 = vector.broadcast %cst_42 : f32 to vector<16x64xf32>
    %103 = arith.addf %101, %102 : vector<16x64xf32>
    %104 = arith.mulf %103, %93 : vector<16x64xf32>
    %cst_43 = arith.constant 0.254829586 : f32
    %105 = vector.broadcast %cst_43 : f32 to vector<16x64xf32>
    %106 = arith.addf %104, %105 : vector<16x64xf32>
    %107 = arith.mulf %106, %93 : vector<16x64xf32>
    %cst_44 = arith.constant 0.000000e+00 : f32
    %108 = vector.broadcast %cst_44 : f32 to vector<16x64xf32>
    %109 = arith.subf %108, %87 : vector<16x64xf32>
    %110 = arith.mulf %109, %87 : vector<16x64xf32>
    %111 = math.exp %110 : vector<16x64xf32>
    %112 = arith.mulf %107, %111 : vector<16x64xf32>
    %cst_45 = arith.constant 1.000000e+00 : f32
    %113 = vector.broadcast %cst_45 : f32 to vector<16x64xf32>
    %114 = arith.subf %113, %112 : vector<16x64xf32>
    %115 = arith.mulf %86, %114 : vector<16x64xf32>
    %cst_46 = arith.constant 1.000000e+00 : f32
    %116 = vector.broadcast %cst_46 : f32 to vector<16x64xf32>
    %117 = arith.addf %116, %115 : vector<16x64xf32>
    %118 = arith.mulf %79, %117 : vector<16x64xf32>
    %c0_47 = arith.constant 0 : index
    %c0_48 = arith.constant 0 : index
    %119 = vector.load %arg7[%c0_47, %c0_48] : memref<64x32xf32, #tpu.memory_space<vmem>>, vector<64x32xf32>
    %cst_49 = arith.constant dense<0.000000e+00> : vector<16x32xf32>
    %120 = tpu.matmul %118, %119, %cst_49 {dimension_numbers = #tpu.dot_dimension_numbers<[1], [0], [0], [1], [0, 0, 1, 1], [], []>} : vector<16x64xf32>, vector<64x32xf32>, vector<16x32xf32> -> vector<16x32xf32>
    %c0_50 = arith.constant 0 : index
    %c0_51 = arith.constant 0 : index
    %121 = vector.load %arg8[%c0_50, %c0_51] : memref<1x32xf32, #tpu.memory_space<vmem>>, vector<1x32xf32>
    %122 = vector.broadcast %121 : vector<1x32xf32> to vector<16x32xf32>
    %123 = arith.addf %120, %122 : vector<16x32xf32>
    %c0_52 = arith.constant 0 : index
    %c0_53 = arith.constant 0 : index
    %c0_54 = arith.constant 0 : index
    %124 = vector.load %arg11[%c0_52, %c0_53, %c0_54] : memref<1x16x32xf32, #tpu.memory_space<vmem>>, vector<1x16x32xf32>
    %125 = vector.shape_cast %124 : vector<1x16x32xf32> to vector<16x32xf32>
    %126 = vector.shape_cast %123 : vector<16x32xf32> to vector<1x16x32xf32>
    tpu.vector_store %arg11[%c0_52, %c0_53, %c0_54], %126 {strides = array<i32>} : memref<1x16x32xf32, #tpu.memory_space<vmem>>, vector<1x16x32xf32>,
    return
  }
  func.func @transform_0(%arg0: i32) -> (i32, i32, i32) {
    %c0_i32 = arith.constant 0 : i32
    %c0_i32_0 = arith.constant 0 : i32
    %c0_i32_1 = arith.constant 0 : i32
    return %arg0, %c0_i32, %c0_i32_0 : i32, i32, i32
  }
  func.func @transform_1(%arg0: i32) -> (i32, i32) {
    %c0_i32 = arith.constant 0 : i32
    %c0_i32_0 = arith.constant 0 : i32
    %c0_i32_1 = arith.constant 0 : i32
    return %c0_i32, %c0_i32_0 : i32, i32
  }
  func.func @transform_2(%arg0: i32) -> (i32, i32) {
    %c0_i32 = arith.constant 0 : i32
    %c0_i32_0 = arith.constant 0 : i32
    %c0_i32_1 = arith.constant 0 : i32
    return %c0_i32, %c0_i32_0 : i32, i32
  }
  func.func @transform_3(%arg0: i32) -> (i32, i32) {
    %c0_i32 = arith.constant 0 : i32
    %c0_i32_0 = arith.constant 0 : i32
    %c0_i32_1 = arith.constant 0 : i32
    return %c0_i32, %c0_i32_0 : i32, i32
  }
  func.func @transform_4(%arg0: i32) -> (i32, i32) {
    %c0_i32 = arith.constant 0 : i32
    %c0_i32_0 = arith.constant 0 : i32
    %c0_i32_1 = arith.constant 0 : i32
    return %c0_i32, %c0_i32_0 : i32, i32
  }
  func.func @transform_5(%arg0: i32) -> (i32, i32) {
    %c0_i32 = arith.constant 0 : i32
    %c0_i32_0 = arith.constant 0 : i32
    %c0_i32_1 = arith.constant 0 : i32
    return %c0_i32, %c0_i32_0 : i32, i32
  }
  func.func @transform_6(%arg0: i32) -> (i32, i32) {
    %c0_i32 = arith.constant 0 : i32
    %c0_i32_0 = arith.constant 0 : i32
    %c0_i32_1 = arith.constant 0 : i32
    return %c0_i32, %c0_i32_0 : i32, i32
  }
  func.func @transform_7(%arg0: i32) -> (i32, i32) {
    %c0_i32 = arith.constant 0 : i32
    %c0_i32_0 = arith.constant 0 : i32
    %c0_i32_1 = arith.constant 0 : i32
    return %c0_i32, %c0_i32_0 : i32, i32
  }
  func.func @transform_8(%arg0: i32) -> (i32, i32) {
    %c0_i32 = arith.constant 0 : i32
    %c0_i32_0 = arith.constant 0 : i32
    %c0_i32_1 = arith.constant 0 : i32
    return %c0_i32, %c0_i32_0 : i32, i32
  }
  func.func @transform_9(%arg0: i32) -> (i32, i32) {
    %c0_i32 = arith.constant 0 : i32
    %c0_i32_0 = arith.constant 0 : i32
    %c0_i32_1 = arith.constant 0 : i32
    return %c0_i32, %c0_i32_0 : i32, i32
  }
  func.func @transform_10(%arg0: i32) -> (i32, i32, i32) {
    %c0_i32 = arith.constant 0 : i32
    %c0_i32_0 = arith.constant 0 : i32
    %c0_i32_1 = arith.constant 0 : i32
    return %arg0, %c0_i32, %c0_i32_0 : i32, i32, i32
  }
}

</mosaic_0001>

<llo_original>
// kernel: tpu_custom_call.1
$region0: #{tpu_custom_call.1}
  #allocation0 [shape = 'u32[]', space=smem, size = 0x4, offset = 0x4, fixed_abs, tag = 'smem constant byte address 0x4 - core index']
  #allocation1 [shape = 'u32[72,128]{1,0:T(1,128)}', space=vmem, size = 0x9000, scoped, tag = 'internal scratch']
  #allocation2 [shape = 'f32[29,64]{1,0:T(8,128)}', space=vmem, size = 0x4000, scoped, tag = 'scratch operand']
  %s0 = inlined_call_operand.vmem [shape: f32[2,16,32], index: 0, kind: input, shape index: {}]
  %s1 = inlined_call_operand.vmem [shape: f32[32,64], index: 1, kind: input, shape index: {}]
  %s2 = inlined_call_operand.vmem [shape: f32[1,64], index: 2, kind: input, shape index: {}]
  %s3 = inlined_call_operand.vmem [shape: f32[1,64], index: 3, kind: input, shape index: {}]
  %s4 = inlined_call_operand.vmem [shape: f32[9,64], index: 4, kind: input, shape index: {}]
  %s5 = inlined_call_operand.vmem [shape: f32[1,64], index: 5, kind: input, shape index: {}]
  %s6 = inlined_call_operand.vmem [shape: f32[64,32], index: 6, kind: input, shape index: {}]
  %s7 = inlined_call_operand.vmem [shape: f32[1,32], index: 7, kind: input, shape index: {}]
  %s8 = inlined_call_operand.vmem [shape: f32[16,1], index: 8, kind: input, shape index: {}]
  %s9 = inlined_call_operand.vmem [shape: f32[16,1], index: 9, kind: input, shape index: {}]
  %s10 = inlined_call_operand.hbm [shape: f32[2,16,32], index: 10, kind: output, shape index: {}]
  %s11 = sld [smem:[#allocation0]]
  $region73: #{tpu_custom_call.1} parent=0
    _
  %s13 = ssub.s32 1, %s11
  %s14 = scalar_select 0, %s13, %s11
  $region1: #{tpu_custom_call.1} parent=0
    #allocation3 [shape = 'u8[16384]{0}', space=vmem, size = 0x4000, scoped, tag = 'output window, operand 0']
    #allocation4 [shape = 's32[2]{0}', space=sflag, size = 0x8, scoped, tag = 'scoped memory for tpu_custom_call.1']
    %15 = vsyncpa [#allocation4], 0
    %s16 = scalar_lea.sflag [#allocation4], 1
    %17 = vsyncpa %s16, 0
    loop: start=0, step=1, limit=4
    $region2: #{tpu_custom_call.1} parent=1 // loop_pre_header
      _
    $region3: #{tpu_custom_call.1} parent=1 // loop_header
      %s19 = sphi 0, %s23
      %p20 = scmp.ge.s32.totalorder %s19, 4
      %s29 = sphi 0, %s31
      %s32 = sphi 0, %s29
      %s33 = sphi 0, %s32
      %s49 = sphi 0, %s33
      %s53 = sphi 0, %s53
      %s55 = sphi 0, %s53
      %s56 = sphi 0, %s55
      %s70 = sphi 0, %s56
      %s74 = sphi 0, %s74
      %s76 = sphi 0, %s74
      %s77 = sphi 0, %s76
      %s91 = sphi 0, %s77
      %s95 = sphi 0, %s95
      %s97 = sphi 0, %s95
      %s98 = sphi 0, %s97
      %s112 = sphi 0, %s98
      %s116 = sphi 0, %s116
      %s118 = sphi 0, %s116
      %s119 = sphi 0, %s118
      %s133 = sphi 0, %s119
      %s137 = sphi 0, %s137
      %s139 = sphi 0, %s137
      %s140 = sphi 0, %s139
      %s154 = sphi 0, %s140
      %s158 = sphi 0, %s158
      %s160 = sphi 0, %s158
      %s161 = sphi 0, %s160
      %s175 = sphi 0, %s161
      %s179 = sphi 0, %s179
      %s181 = sphi 0, %s179
      %s182 = sphi 0, %s181
      %s196 = sphi 0, %s182
      %s200 = sphi 0, %s200
      %s202 = sphi 0, %s200
      %s203 = sphi 0, %s202
      %s217 = sphi 0, %s203
      %s221 = sphi 0, %s221
      %s223 = sphi 0, %s221
      %s224 = sphi 0, %s223
      %s238 = sphi 0, %s224
      %s244 = sphi 0, %s246
      %s247 = sphi 0, %s244
      %s248 = sphi 0, %s247
      %s264 = sphi 0, %s248
    $region4: #{tpu_custom_call.1} parent=1 // loop_header_branch
      %22 = sbr.rel (%p20) target = $region8
    $region5: #{tpu_custom_call.1} parent=1 // loop_body
      %s24 = ssub.s32 %s19, 1
      %s25 = ssub.s32 %s19, 2
      %s26 = sadd.s32 %s19, 1
      %s27 = ssub.s32 %s19, %s26
      %p28 = scmp.eq.s32.totalorder %s27, 0
      %s30 = sadd.s32 %s29, 1
      %s31 = scalar_select %p28, %s29, %s30
      %p34 = pneg %p28
      %p35 = scmp.eq.s32.totalorder %s19, 1
      %p36 = por %p34, %p35
      %p37 = scmp.ne.s32.totalorder %s29, %s32
      %p38 = scmp.eq.s32.totalorder %s19, 0
      %p39 = por %p37, %p38
      %p40 = scmp.ne.s32.totalorder %s29, %s32
      %p41 = scmp.eq.s32.totalorder %s24, 1
      %p42 = por %p40, %p41
      %p43 = scmp.ne.s32.totalorder %s32, %s33
      %p44 = scmp.eq.s32.totalorder %s24, 0
      %p45 = por %p43, %p44
      %p46 = scmp.ne.s32.totalorder %s32, %s33
      %p47 = scmp.eq.s32.totalorder %s25, 1
      %p48 = por %p46, %p47
      %p50 = scmp.ne.s32.totalorder %s33, %s49
      %p51 = scmp.eq.s32.totalorder %s25, 0
      %p52 = por %p50, %p51
      %s54 = sadd.s32 %s53, 1
      %p57 = scmp.eq.s32.totalorder %s19, 1
      %p58 = scmp.ne.s32.totalorder %s53, %s55
      %p59 = scmp.eq.s32.totalorder %s19, 0
      %p60 = por %p58, %p59
      %p61 = scmp.ne.s32.totalorder %s53, %s55
      %p62 = scmp.eq.s32.totalorder %s24, 1
      %p63 = por %p61, %p62
      %p64 = scmp.ne.s32.totalorder %s55, %s56
      %p65 = scmp.eq.s32.totalorder %s24, 0
      %p66 = por %p64, %p65
      %p67 = scmp.ne.s32.totalorder %s55, %s56
      %p68 = scmp.eq.s32.totalorder %s25, 1
      %p69 = por %p67, %p68
      %p71 = scmp.ne.s32.totalorder %s56, %s70
      %p72 = scmp.eq.s32.totalorder %s25, 0
      %p73 = por %p71, %p72
      %s75 = sadd.s32 %s74, 1
      %p78 = scmp.eq.s32.totalorder %s19, 1
      %p79 = scmp.ne.s32.totalorder %s74, %s76
      %p80 = scmp.eq.s32.totalorder %s19, 0
      %p81 = por %p79, %p80
      %p82 = scmp.ne.s32.totalorder %s74, %s76
      %p83 = scmp.eq.s32.totalorder %s24, 1
      %p84 = por %p82, %p83
      %p85 = scmp.ne.s32.totalorder %s76, %s77
      %p86 = scmp.eq.s32.totalorder %s24, 0
      %p87 = por %p85, %p86
      %p88 = scmp.ne.s32.totalorder %s76, %s77
      %p89 = scmp.eq.s32.totalorder %s25, 1
      %p90 = por %p88, %p89
      %p92 = scmp.ne.s32.totalorder %s77, %s91
      %p93 = scmp.eq.s32.totalorder %s25, 0
      %p94 = por %p92, %p93
      %s96 = sadd.s32 %s95, 1
      %p99 = scmp.eq.s32.totalorder %s19, 1
      %p100 = scmp.ne.s32.totalorder %s95, %s97
      %p101 = scmp.eq.s32.totalorder %s19, 0
      %p102 = por %p100, %p101
      %p103 = scmp.ne.s32.totalorder %s95, %s97
      %p104 = scmp.eq.s32.totalorder %s24, 1
      %p105 = por %p103, %p104
      %p106 = scmp.ne.s32.totalorder %s97, %s98
      %p107 = scmp.eq.s32.totalorder %s24, 0
      %p108 = por %p106, %p107
      %p109 = scmp.ne.s32.totalorder %s97, %s98
      %p110 = scmp.eq.s32.totalorder %s25, 1
      %p111 = por %p109, %p110
      %p113 = scmp.ne.s32.totalorder %s98, %s112
      %p114 = scmp.eq.s32.totalorder %s25, 0
      %p115 = por %p113, %p114
      %s117 = sadd.s32 %s116, 1
      %p120 = scmp.eq.s32.totalorder %s19, 1
      %p121 = scmp.ne.s32.totalorder %s116, %s118
      %p122 = scmp.eq.s32.totalorder %s19, 0
      %p123 = por %p121, %p122
      %p124 = scmp.ne.s32.totalorder %s116, %s118
      %p125 = scmp.eq.s32.totalorder %s24, 1
      %p126 = por %p124, %p125
      %p127 = scmp.ne.s32.totalorder %s118, %s119
      %p128 = scmp.eq.s32.totalorder %s24, 0
      %p129 = por %p127, %p128
      %p130 = scmp.ne.s32.totalorder %s118, %s119
      %p131 = scmp.eq.s32.totalorder %s25, 1
      %p132 = por %p130, %p131
      %p134 = scmp.ne.s32.totalorder %s119, %s133
      %p135 = scmp.eq.s32.totalorder %s25, 0
      %p136 = por %p134, %p135
      %s138 = sadd.s32 %s137, 1
      %p141 = scmp.eq.s32.totalorder %s19, 1
      %p142 = scmp.ne.s32.totalorder %s137, %s139
      %p143 = scmp.eq.s32.totalorder %s19, 0
      %p144 = por %p142, %p143
      %p145 = scmp.ne.s32.totalorder %s137, %s139
      %p146 = scmp.eq.s32.totalorder %s24, 1
      %p147 = por %p145, %p146
      %p148 = scmp.ne.s32.totalorder %s139, %s140
      %p149 = scmp.eq.s32.totalorder %s24, 0
      %p150 = por %p148, %p149
      %p151 = scmp.ne.s32.totalorder %s139, %s140
      %p152 = scmp.eq.s32.totalorder %s25, 1
      %p153 = por %p151, %p152
      %p155 = scmp.ne.s32.totalorder %s140, %s154
      %p156 = scmp.eq.s32.totalorder %s25, 0
      %p157 = por %p155, %p156
      %s159 = sadd.s32 %s158, 1
      %p162 = scmp.eq.s32.totalorder %s19, 1
      %p163 = scmp.ne.s32.totalorder %s158, %s160
      %p164 = scmp.eq.s32.totalorder %s19, 0
      %p165 = por %p163, %p164
      %p166 = scmp.ne.s32.totalorder %s158, %s160
      %p167 = scmp.eq.s32.totalorder %s24, 1
      %p168 = por %p166, %p167
      %p169 = scmp.ne.s32.totalorder %s160, %s161
      %p170 = scmp.eq.s32.totalorder %s24, 0
      %p171 = por %p169, %p170
      %p172 = scmp.ne.s32.totalorder %s160, %s161
      %p173 = scmp.eq.s32.totalorder %s25, 1
      %p174 = por %p172, %p173
      %p176 = scmp.ne.s32.totalorder %s161, %s175
      %p177 = scmp.eq.s32.totalorder %s25, 0
      %p178 = por %p176, %p177
      %s180 = sadd.s32 %s179, 1
      %p183 = scmp.eq.s32.totalorder %s19, 1
      %p184 = scmp.ne.s32.totalorder %s179, %s181
      %p185 = scmp.eq.s32.totalorder %s19, 0
      %p186 = por %p184, %p185
      %p187 = scmp.ne.s32.totalorder %s179, %s181
      %p188 = scmp.eq.s32.totalorder %s24, 1
      %p189 = por %p187, %p188
      %p190 = scmp.ne.s32.totalorder %s181, %s182
      %p191 = scmp.eq.s32.totalorder %s24, 0
      %p192 = por %p190, %p191
      %p193 = scmp.ne.s32.totalorder %s181, %s182
      %p194 = scmp.eq.s32.totalorder %s25, 1
      %p195 = por %p193, %p194
      %p197 = scmp.ne.s32.totalorder %s182, %s196
      %p198 = scmp.eq.s32.totalorder %s25, 0
      %p199 = por %p197, %p198
      %s201 = sadd.s32 %s200, 1
      %p204 = scmp.eq.s32.totalorder %s19, 1
      %p205 = scmp.ne.s32.totalorder %s200, %s202
      %p206 = scmp.eq.s32.totalorder %s19, 0
      %p207 = por %p205, %p206
      %p208 = scmp.ne.s32.totalorder %s200, %s202
      %p209 = scmp.eq.s32.totalorder %s24, 1
      %p210 = por %p208, %p209
      %p211 = scmp.ne.s32.totalorder %s202, %s203
      %p212 = scmp.eq.s32.totalorder %s24, 0
      %p213 = por %p211, %p212
      %p214 = scmp.ne.s32.totalorder %s202, %s203
      %p215 = scmp.eq.s32.totalorder %s25, 1
      %p216 = por %p214, %p215
      %p218 = scmp.ne.s32.totalorder %s203, %s217
      %p219 = scmp.eq.s32.totalorder %s25, 0
      %p220 = por %p218, %p219
      %s222 = sadd.s32 %s221, 1
      %p225 = scmp.eq.s32.totalorder %s19, 1
      %p226 = scmp.ne.s32.totalorder %s221, %s223
      %p227 = scmp.eq.s32.totalorder %s19, 0
      %p228 = por %p226, %p227
      %p229 = scmp.ne.s32.totalorder %s221, %s223
      %p230 = scmp.eq.s32.totalorder %s24, 1
      %p231 = por %p229, %p230
      %p232 = scmp.ne.s32.totalorder %s223, %s224
      %p233 = scmp.eq.s32.totalorder %s24, 0
      %p234 = por %p232, %p233
      %p235 = scmp.ne.s32.totalorder %s223, %s224
      %p236 = scmp.eq.s32.totalorder %s25, 1
      %p237 = por %p235, %p236
      %p239 = scmp.ne.s32.totalorder %s224, %s238
      %p240 = scmp.eq.s32.totalorder %s25, 0
      %p241 = por %p239, %p240
      %s242 = ssub.s32 %s19, %s26
      %p243 = scmp.eq.s32.totalorder %s242, 0
      %s245 = sadd.s32 %s244, 1
      %s246 = scalar_select %p243, %s244, %s245
      %p249 = pneg %p243
      %p250 = scmp.eq.s32.totalorder %s19, 1
      %p251 = por %p249, %p250
      %p252 = scmp.ne.s32.totalorder %s244, %s247
      %p253 = scmp.eq.s32.totalorder %s19, 0
      %p254 = por %p252, %p253
      %p255 = scmp.ne.s32.totalorder %s244, %s247
      %p256 = scmp.eq.s32.totalorder %s24, 1
      %p257 = por %p255, %p256
      %p258 = scmp.ne.s32.totalorder %s247, %s248
      %p259 = scmp.eq.s32.totalorder %s24, 0
      %p260 = por %p258, %p259
      %p261 = scmp.ne.s32.totalorder %s247, %s248
      %p262 = scmp.eq.s32.totalorder %s25, 1
      %p263 = por %p261, %p262
      %p265 = scmp.ne.s32.totalorder %s248, %s264
      %p266 = scmp.eq.s32.totalorder %s25, 0
      %p267 = por %p265, %p266
      %p268 = scmp.le.s32.totalorder 1, %s19
      %p269 = scmp.lt.s32.totalorder %s19, 3
      %p270 = pnand %p268, %p269
      %p271 = pneg %p270
      // Predicated region
      $region9: #{tpu_custom_call.1} parent=5 // pred_check
        _
      $region10: #{tpu_custom_call.1} parent=5 // pred_check_branch
        %273 = sbr.rel (%p270) target = $region12
      $region11: #{tpu_custom_call.1} parent=5 // pred_region
        %s274 = ssub.s32 %s19, 1
        // Predicated region
        $region13: #{tpu_custom_call.1} parent=11 // pred_check
          %p275 = pneg %p66
        $region14: #{tpu_custom_call.1} parent=11 // pred_check_branch
          %277 = sbr.rel (%p275) target = $region16
        $region15: #{tpu_custom_call.1} parent=11 // pred_region
          _
        $region16: #{tpu_custom_call.1} parent=11 // pred_fallthru
          _
        // Predicated region
        $region17: #{tpu_custom_call.1} parent=11 // pred_check
          %p278 = pneg %p87
        $region18: #{tpu_custom_call.1} parent=11 // pred_check_branch
          %280 = sbr.rel (%p278) target = $region20
        $region19: #{tpu_custom_call.1} parent=11 // pred_region
          _
        $region20: #{tpu_custom_call.1} parent=11 // pred_fallthru
          _
        // Predicated region
        $region21: #{tpu_custom_call.1} parent=11 // pred_check
          %p281 = pneg %p108
        $region22: #{tpu_custom_call.1} parent=11 // pred_check_branch
          %283 = sbr.rel (%p281) target = $region24
        $region23: #{tpu_custom_call.1} parent=11 // pred_region
          _
        $region24: #{tpu_custom_call.1} parent=11 // pred_fallthru
          _
        // Predicated region
        $region25: #{tpu_custom_call.1} parent=11 // pred_check
          %p284 = pneg %p129
        $region26: #{tpu_custom_call.1} parent=11 // pred_check_branch
          %286 = sbr.rel (%p284) target = $region28
        $region27: #{tpu_custom_call.1} parent=11 // pred_region
          _
        $region28: #{tpu_custom_call.1} parent=11 // pred_fallthru
          _
        // Predicated region
        $region29: #{tpu_custom_call.1} parent=11 // pred_check
          %p287 = pneg %p150
        $region30: #{tpu_custom_call.1} parent=11 // pred_check_branch
          %289 = sbr.rel (%p287) target = $region32
        $region31: #{tpu_custom_call.1} parent=11 // pred_region
          _
        $region32: #{tpu_custom_call.1} parent=11 // pred_fallthru
          _
        // Predicated region
        $region33: #{tpu_custom_call.1} parent=11 // pred_check
          %p290 = pneg %p171
        $region34: #{tpu_custom_call.1} parent=11 // pred_check_branch
          %292 = sbr.rel (%p290) target = $region36
        $region35: #{tpu_custom_call.1} parent=11 // pred_region
          _
        $region36: #{tpu_custom_call.1} parent=11 // pred_fallthru
          _
        // Predicated region
        $region37: #{tpu_custom_call.1} parent=11 // pred_check
          %p293 = pneg %p192
        $region38: #{tpu_custom_call.1} parent=11 // pred_check_branch
          %295 = sbr.rel (%p293) target = $region40
        $region39: #{tpu_custom_call.1} parent=11 // pred_region
          _
        $region40: #{tpu_custom_call.1} parent=11 // pred_fallthru
          _
        // Predicated region
        $region41: #{tpu_custom_call.1} parent=11 // pred_check
          %p296 = pneg %p213
        $region42: #{tpu_custom_call.1} parent=11 // pred_check_branch
          %298 = sbr.rel (%p296) target = $region44
        $region43: #{tpu_custom_call.1} parent=11 // pred_region
          _
        $region44: #{tpu_custom_call.1} parent=11 // pred_fallthru
          _
        // Predicated region
        $region45: #{tpu_custom_call.1} parent=11 // pred_check
          %p299 = pneg %p234
        $region46: #{tpu_custom_call.1} parent=11 // pred_check_branch
          %301 = sbr.rel (%p299) target = $region48
        $region47: #{tpu_custom_call.1} parent=11 // pred_region
          _
        $region48: #{tpu_custom_call.1} parent=11 // pred_fallthru
          _
      $region12: #{tpu_custom_call.1} parent=5 // pred_fallthru
        _
      %p302 = scmp.lt.s32.totalorder %s19, 2
      // Predicated region
      $region49: #{tpu_custom_call.1} parent=5 // pred_check
        %p303 = pneg %p302
      $region50: #{tpu_custom_call.1} parent=5 // pred_check_branch
        %305 = sbr.rel (%p303) target = $region52
      $region51: #{tpu_custom_call.1} parent=5 // pred_region
        // Predicated region
        $region53: #{tpu_custom_call.1} parent=51 // pred_check
          %p306 = pneg %p39
        $region54: #{tpu_custom_call.1} parent=51 // pred_check_branch
          %308 = sbr.rel (%p306) target = $region56
        $region55: #{tpu_custom_call.1} parent=51 // pred_region
          %p309 = scmp.lt.s32.totalorder %s19, 1
          %s310 = scalar_select %p309, %s19, 1
          %s311 = smul.addr %s310, 2
          %s312 = smul.addr %s311, 8
          %s313 = scalar_lea.vmem %s0, %s312
        $region56: #{tpu_custom_call.1} parent=51 // pred_fallthru
          _
      $region52: #{tpu_custom_call.1} parent=5 // pred_fallthru
        _
      %p314 = scmp.le.s32.totalorder 1, %s19
      %p315 = scmp.lt.s32.totalorder %s19, 3
      %p316 = pnand %p314, %p315
      %p317 = pneg %p316
      // Predicated region
      $region57: #{tpu_custom_call.1} parent=5 // pred_check
        _
      $region58: #{tpu_custom_call.1} parent=5 // pred_check_branch
        %319 = sbr.rel (%p316) target = $region60
      $region59: #{tpu_custom_call.1} parent=5 // pred_region
        %s320 = ssub.s32 %s19, 1
        %p321 = scmp.lt.s32.totalorder %s24, 1
        %s322 = scalar_select %p321, %s24, 1
        %s323 = smul.addr %s322, 2
        %s324 = smul.addr %s323, 8
        %s325 = scalar_lea.vmem %s0, %s324
        %p326 = pneg %p45
        %p327 = pneg %p42
        %p328 = pneg %p66
        %p329 = pneg %p63
        %p330 = pneg %p87
        %p331 = pneg %p84
        %p332 = pneg %p108
        %p333 = pneg %p105
        %p334 = pneg %p129
        %p335 = pneg %p126
        %p336 = pneg %p150
        %p337 = pneg %p147
        %p338 = pneg %p171
        %p339 = pneg %p168
        %p340 = pneg %p192
        %p341 = pneg %p189
        %p342 = pneg %p213
        %p343 = pneg %p210
        %p344 = pneg %p234
        %p345 = pneg %p231
        %p346 = pneg %p260
        %p347 = pneg %p257
        %s348 = sand.u32 %s247, 1
        %s349 = scalar_lea.sflag [#allocation4], %s348
        %s350 = sand.u32 %s247, 1
        %s351 = smul.addr %s350, 16
        %s352 = scalar_lea.vmem [#allocation3], %s351
        %p353 = scmp.lt.s32.totalorder %s24, 1
        %s354 = scalar_select %p353, %s24, 1
        %s355 = smul.addr %s354, 2
        %s356 = smul.addr %s355, 8
        %s357 = scalar_lea.vmem %s0, %s356
        %v358 = vld [vmem:[%s357] sm:$0xff]
        %v359 = vld [vmem:[%s357 + $0x8] sm:$0xff]
        %v360 = vld [vmem:[%s1] sm:$0xff]
        %v361 = vld [vmem:[%s1 + $0x8] sm:$0xff]
        %v362 = vld [vmem:[%s1 + $0x10] sm:$0xff]
        %v363 = vld [vmem:[%s1 + $0x18] sm:$0xff]
        %v364 = vld [vmem:[%s2] sm:$0x1]
        %v366 = vperm.slane %v364, 0
        %vm368 = vcmask 261120
        %v370 = vsel %vm368, %v358, 0
        %v373 = vsel %vm368, %v359, 0
        %375 = vmatpush.msra.mxu0 0.0
        %376 = vmatpush.msra.mxu0 0.0
        %377 = vmatpush.msra.mxu0 0.0
        %378 = vmatpush.msra.mxu0 0.0
        %379 = vmatpush.msra.mxu0 0.0
        %380 = vmatpush.msra.mxu0 0.0
        %381 = vmatpush.msra.mxu0 0.0
        %382 = vmatpush.msra.mxu0 0.0
        %383 = vmatpush.msra.mxu0 0.0
        %384 = vmatpush.msra.mxu0 0.0
        %385 = vmatpush.msra.mxu0 0.0
        %386 = vmatpush.msra.mxu0 0.0
        %387 = vmatpush.msra.mxu0 %v363
        %388 = vmatpush.msra.mxu0 %v362
        %389 = vmatpush.msra.mxu0 %v361
        %390 = vmatpush.msra.mxu0 %v360
        %391 = vmatmul.f32.gmra.mxu0 %v370
        %v392 = vpop.f32.mrf.mxu0
        %v393 = vadd.f32 %v366, %v392
        %394 = vmatmul.f32.gmra.mxu0 %v373
        %v395 = vpop.f32.mrf.mxu0
        %v396 = vadd.f32 %v366, %v395
        %397 = vdwg.mxu0
        %v398 = vld [vmem:[%s3] sm:$0x1]
        %v400 = vperm.slane %v398, 0
        %v402 = vmul.f32 %v393, %v400
        %v403 = vmul.f32 %v396, %v400
        %vm404 = vcmask 523264
        %405 = vst.msk [vmem:[#allocation2] sm:$0xff] %vm404, 0.0
        %406 = vst.msk [vmem:[#allocation2 + $0x8] sm:$0xff] %vm404, 0.0
        %407 = vst.msk [vmem:[#allocation2 + $0x10] sm:$0xff] %vm404, 0.0
        %vm408 = vcmask 520192
        %409 = vst.msk [vmem:[#allocation2 + $0x18] sm:$0x1f] %vm408, 0.0
        %410 = vst.msk [vmem:[#allocation2 + $0x8] sm:$0xff] %vm404, %v393
        %411 = vst.msk [vmem:[#allocation2 + $0x10] sm:$0xff] %vm404, %v396
        %v412 = vld [vmem:[%s4] sm:$0xff]
        %v413 = vld [vmem:[%s4 + $0x8] sm:$0x1]
        %v414 = vld [vmem:[%s8] sm:$0xff]
        %v415 = vld [vmem:[%s8 + $0x8] sm:$0xff]
        %v416 = vld [vmem:[%s9] sm:$0xff]
        %v417 = vld [vmem:[%s9 + $0x8] sm:$0xff]
        %v418 = vld [vmem:[#allocation2 + $0x3] sm:$0xff]
        %v419 = vld [vmem:[#allocation2 + $0xb] sm:$0xff]
        %421 = vset.pattern.permute.xlu0 0
        %422 = vperm.xlu0 %421, %v414
        %v423 = vpop.permute.xlu0 %422
        %426 = vset.pattern.permute.xlu0 0
        %427 = vperm.xlu0 %426, %v415
        %v428 = vpop.permute.xlu0 %427
        %v430 = vmul.f32 %v418, %v423
        %v431 = vmul.f32 %v419, %v428
        %v432 = vperm.slane %v412, 0
        %v433 = vmul.f32 %v430, %v432
        %v434 = vmul.f32 %v431, %v432
        %v435 = vadd.f32 %v433, 0.0
        %v436 = vadd.f32 %v434, 0.0
        %v437 = vld [vmem:[#allocation2 + $0x4] sm:$0xff]
        %v438 = vld [vmem:[#allocation2 + $0xc] sm:$0xff]
        %v439 = vperm.slane %v412, 1
        %v440 = vmul.f32 %v437, %v439
        %v441 = vmul.f32 %v438, %v439
        %v442 = vadd.f32 %v435, %v440
        %v443 = vadd.f32 %v436, %v441
        %v444 = vld [vmem:[#allocation2 + $0x5] sm:$0xff]
        %v445 = vld [vmem:[#allocation2 + $0xd] sm:$0xff]
        %447 = vset.pattern.permute.xlu0 0
        %448 = vperm.xlu0 %447, %v416
        %v449 = vpop.permute.xlu0 %448
        %452 = vset.pattern.permute.xlu0 0
        %453 = vperm.xlu0 %452, %v417
        %v454 = vpop.permute.xlu0 %453
        %v456 = vmul.f32 %v444, %v449
        %v457 = vmul.f32 %v445, %v454
        %v458 = vperm.slane %v412, 2
        %v459 = vmul.f32 %v456, %v458
        %v460 = vmul.f32 %v457, %v458
        %v461 = vadd.f32 %v442, %v459
        %v462 = vadd.f32 %v443, %v460
        %v463 = vld [vmem:[#allocation2 + $0x7] sm:$0xff]
        %v464 = vld [vmem:[#allocation2 + $0xf] sm:$0xff]
        %v465 = vmul.f32 %v463, %v423
        %v466 = vmul.f32 %v464, %v428
        %v467 = vperm.slane %v412, 3
        %v468 = vmul.f32 %v465, %v467
        %v469 = vmul.f32 %v466, %v467
        %v470 = vadd.f32 %v461, %v468
        %v471 = vadd.f32 %v462, %v469
        %v472 = vld [vmem:[#allocation2 + $0x8] sm:$0xff]
        %v473 = vld [vmem:[#allocation2 + $0x10] sm:$0xff]
        %v474 = vperm.slane %v412, 4
        %v475 = vmul.f32 %v472, %v474
        %v476 = vmul.f32 %v473, %v474
        %v477 = vadd.f32 %v470, %v475
        %v478 = vadd.f32 %v471, %v476
        %v479 = vld [vmem:[#allocation2 + $0x9] sm:$0xff]
        %v480 = vld [vmem:[#allocation2 + $0x11] sm:$0xff]
        %v481 = vmul.f32 %v479, %v449
        %v482 = vmul.f32 %v480, %v454
        %v483 = vperm.slane %v412, 5
        %v484 = vmul.f32 %v481, %v483
        %v485 = vmul.f32 %v482, %v483
        %v486 = vadd.f32 %v477, %v484
        %v487 = vadd.f32 %v478, %v485
        %v488 = vld [vmem:[#allocation2 + $0xb] sm:$0xff]
        %v489 = vld [vmem:[#allocation2 + $0x13] sm:$0xff]
        %v490 = vmul.f32 %v488, %v423
        %v491 = vmul.f32 %v489, %v428
        %v492 = vperm.slane %v412, 6
        %v493 = vmul.f32 %v490, %v492
        %v494 = vmul.f32 %v491, %v492
        %v495 = vadd.f32 %v486, %v493
        %v496 = vadd.f32 %v487, %v494
        %v497 = vld [vmem:[#allocation2 + $0xc] sm:$0xff]
        %v498 = vld [vmem:[#allocation2 + $0x14] sm:$0xff]
        %v499 = vperm.slane %v412, 7
        %v500 = vmul.f32 %v497, %v499
        %v501 = vmul.f32 %v498, %v499
        %v502 = vadd.f32 %v495, %v500
        %v503 = vadd.f32 %v496, %v501
        %v504 = vld [vmem:[#allocation2 + $0xd] sm:$0xff]
        %v505 = vld [vmem:[#allocation2 + $0x15] sm:$0xff]
        %v506 = vmul.f32 %v504, %v449
        %v507 = vmul.f32 %v505, %v454
        %v508 = vperm.slane %v413, 0
        %v509 = vmul.f32 %v506, %v508
        %v510 = vmul.f32 %v507, %v508
        %v511 = vadd.f32 %v502, %v509
        %v512 = vadd.f32 %v503, %v510
        %v513 = vld [vmem:[%s5] sm:$0x1]
        %v515 = vperm.slane %v513, 0
        %v517 = vadd.f32 %v511, %v515
        %v518 = vadd.f32 %v512, %v515
        %v519 = vadd.f32 %v402, %v517
        %v520 = vadd.f32 %v403, %v518
        %v521 = vmul.f32 %v519, 0.5
        %v522 = vmul.f32 %v520, 0.5
        %v523 = vmul.f32 %v519, 0.70710677
        %v524 = vmul.f32 %v520, 0.70710677
        %vm525 = vcmp.ge.f32.partialorder %v523, 0.0
        %vm526 = vcmp.ge.f32.partialorder %v524, 0.0
        %v527 = vsel %vm525, 1.0, -1.0
        %v528 = vsel %vm526, 1.0, -1.0
        %v529 = vand.u32 2147483647, %v523
        %v530 = vand.u32 2147483647, %v524
        %v531 = vmul.f32 %v529, 0.3275911
        %v532 = vmul.f32 %v530, 0.3275911
        %v533 = vadd.f32 %v531, 1.0
        %v534 = vadd.f32 %v532, 1.0
        %v535 = vrcp.pop %v533
        %v536 = vmul.f32 %v533, %v535
        %v537 = vsub.f32 1.0, %v536
        %v538 = vmul.f32 %v535, %v537
        %v539 = vadd.f32 %v535, %v538
        %vm540 = vweird.f32 %v533
        %vm541 = vweird.f32 %v535
        %vm542 = vmor %vm540, %vm541
        %v543 = vsel %vm542, %v535, %v539
        %v544 = vand.u32 2147483647, %v533
        %vm545 = vcmp.eq.f32.partialorder %v544, 8.507059e+37
        %v546 = vand.u32 %v533, 2147483648
        %v547 = vor.u32 1.1754944e-38, %v546
        %v548 = vsel %vm545, %v547, %v543
        %v549 = vmul.f32 1.0, %v548
        %v550 = vrcp.pop %v534
        %v551 = vmul.f32 %v534, %v550
        %v552 = vsub.f32 1.0, %v551
        %v553 = vmul.f32 %v550, %v552
        %v554 = vadd.f32 %v550, %v553
        %vm555 = vweird.f32 %v534
        %vm556 = vweird.f32 %v550
        %vm557 = vmor %vm555, %vm556
        %v558 = vsel %vm557, %v550, %v554
        %v559 = vand.u32 2147483647, %v534
        %vm560 = vcmp.eq.f32.partialorder %v559, 8.507059e+37
        %v561 = vand.u32 %v534, 2147483648
        %v562 = vor.u32 1.1754944e-38, %v561
        %v563 = vsel %vm560, %v562, %v558
        %v564 = vmul.f32 1.0, %v563
        %v565 = vmul.f32 %v549, 1.0614054
        %v566 = vmul.f32 %v564, 1.0614054
        %v567 = vadd.f32 %v565, -1.4531521
        %v568 = vadd.f32 %v566, -1.4531521
        %v569 = vmul.f32 %v567, %v549
        %v570 = vmul.f32 %v568, %v564
        %v571 = vadd.f32 %v569, 1.4214138
        %v572 = vadd.f32 %v570, 1.4214138
        %v573 = vmul.f32 %v571, %v549
        %v574 = vmul.f32 %v572, %v564
        %v575 = vadd.f32 %v573, -0.28449672
        %v576 = vadd.f32 %v574, -0.28449672
        %v577 = vmul.f32 %v575, %v549
        %v578 = vmul.f32 %v576, %v564
        %v579 = vadd.f32 %v577, 0.2548296
        %v580 = vadd.f32 %v578, 0.2548296
        %v581 = vmul.f32 %v579, %v549
        %v582 = vmul.f32 %v580, %v564
        %v583 = vsub.f32 0.0, %v529
        %v584 = vsub.f32 0.0, %v530
        %v585 = vmul.f32 %v583, %v529
        %v586 = vmul.f32 %v584, %v530
        %v587 = vmul.f32 %v585, 1.442695
        %v588 = vpow.pop %v587
        %v589 = vmul.f32 %v586, 1.442695
        %v590 = vpow.pop %v589
        %v591 = vmul.f32 %v581, %v588
        %v592 = vmul.f32 %v582, %v590
        %v593 = vsub.f32 1.0, %v591
        %v594 = vsub.f32 1.0, %v592
        %v595 = vmul.f32 %v527, %v593
        %v596 = vmul.f32 %v528, %v594
        %v597 = vadd.f32 %v595, 1.0
        %v598 = vadd.f32 %v596, 1.0
        %v599 = vmul.f32 %v521, %v597
        %v600 = vmul.f32 %v522, %v598
        %v601 = vld [vmem:[%s6] sm:$0xff]
        %v602 = vld [vmem:[%s6 + $0x8] sm:$0xff]
        %v603 = vld [vmem:[%s6 + $0x10] sm:$0xff]
        %v604 = vld [vmem:[%s6 + $0x18] sm:$0xff]
        %v605 = vld [vmem:[%s6 + $0x20] sm:$0xff]
        %v606 = vld [vmem:[%s6 + $0x28] sm:$0xff]
        %v607 = vld [vmem:[%s6 + $0x30] sm:$0xff]
        %v608 = vld [vmem:[%s6 + $0x38] sm:$0xff]
        %v609 = vld [vmem:[%s7] sm:$0x1]
        %v611 = vperm.slane %v609, 0
        %v614 = vsel %vm404, %v599, 0
        %v617 = vsel %vm404, %v600, 0
        %619 = vmatpush.msra.mxu0 0.0
        %620 = vmatpush.msra.mxu0 0.0
        %621 = vmatpush.msra.mxu0 0.0
        %622 = vmatpush.msra.mxu0 0.0
        %623 = vmatpush.msra.mxu0 0.0
        %624 = vmatpush.msra.mxu0 0.0
        %625 = vmatpush.msra.mxu0 0.0
        %626 = vmatpush.msra.mxu0 0.0
        %627 = vmatpush.msra.mxu0 %v608
        %628 = vmatpush.msra.mxu0 %v607
        %629 = vmatpush.msra.mxu0 %v606
        %630 = vmatpush.msra.mxu0 %v605
        %631 = vmatpush.msra.mxu0 %v604
        %632 = vmatpush.msra.mxu0 %v603
        %633 = vmatpush.msra.mxu0 %v602
        %634 = vmatpush.msra.mxu0 %v601
        %635 = vmatmul.f32.gmra.mxu0 %v614
        %v636 = vpop.f32.mrf.mxu0
        %v637 = vadd.f32 %v611, %v636
        %638 = vmatmul.f32.gmra.mxu0 %v617
        %v639 = vpop.f32.mrf.mxu0
        %v640 = vadd.f32 %v611, %v639
        %641 = vdwg.mxu0
        %642 = vst.msk [vmem:[%s352] sm:$0xff] %vm368, %v637
        %643 = vst.msk [vmem:[%s352 + $0x8] sm:$0xff] %vm368, %v640
        %s644 = sand.u32 %s247, 1
        %s645 = scalar_lea.sflag [#allocation4], %s644
        %s646 = sand.u32 %s247, 1
        %s647 = smul.addr %s646, 16
        %s648 = scalar_lea.vmem [#allocation3], %s647
        // Predicated region
        $region61: #{tpu_custom_call.1} parent=59 // pred_check
          %p649 = pneg %p257
        $region62: #{tpu_custom_call.1} parent=59 // pred_check_branch
          %651 = sbr.rel (%p649) target = $region64
        $region63: #{tpu_custom_call.1} parent=59 // pred_region
          %653 = vsyncadd %s645, 0
          %s654 = smul.addr %s24, 2
          %s655 = smul.addr %s654, 8
          %s656 = scalar_lea.hbm %s10, %s655
          %s657 = sshll.u32 %s648, 4
          %s658 = int_to_ptr.vmem [resolvable:$true] %s657
          %s659 = sshll.u32 %s656, 4
          %s660 = int_to_ptr.hbm [resolvable:$true] %s659
          %665 = dma.vmem_to_hbm [thread:$0]  %s658, 256, %s660, %s645, 128, 128, 8
        $region64: #{tpu_custom_call.1} parent=59 // pred_fallthru
          _
      $region60: #{tpu_custom_call.1} parent=5 // pred_fallthru
        _
      %p666 = scmp.le.s32.totalorder 2, %s19
      // Predicated region
      $region65: #{tpu_custom_call.1} parent=5 // pred_check
        %p667 = pneg %p666
      $region66: #{tpu_custom_call.1} parent=5 // pred_check_branch
        %669 = sbr.rel (%p667) target = $region68
      $region67: #{tpu_custom_call.1} parent=5 // pred_region
        %s670 = ssub.s32 %s19, 2
        // Predicated region
        $region69: #{tpu_custom_call.1} parent=67 // pred_check
          %p671 = pneg %p263
        $region70: #{tpu_custom_call.1} parent=67 // pred_check_branch
          %673 = sbr.rel (%p671) target = $region72
        $region71: #{tpu_custom_call.1} parent=67 // pred_region
          %s674 = sand.u32 %s248, 1
          %s675 = scalar_lea.sflag [#allocation4], %s674
          %s676 = sand.u32 %s248, 1
          %s677 = smul.addr %s676, 16
          %s678 = scalar_lea.vmem [#allocation3], %s677
          %680 = dma.done %s675, 256
        $region72: #{tpu_custom_call.1} parent=67 // pred_fallthru
          _
      $region68: #{tpu_custom_call.1} parent=5 // pred_fallthru
        _
    $region6: #{tpu_custom_call.1} parent=1 // loop_footer
      %s23 = sadd.s32 1, %s19
    $region7: #{tpu_custom_call.1} parent=1 // loop_footer_branch
      %18 = sbr.rel target = $region3
    $region8: #{tpu_custom_call.1} parent=1 // loop_exit
      _
    %681 = vsyncpa [#allocation4], 1
    %s682 = scalar_lea.sflag [#allocation4], 1
    %683 = vsyncpa %s682, 1

</llo_original>
